<compile_context>
chip_gen: v7x
topology: tpu7x:2x2x1
jax: 0.10.0
libtpu: 0.0.40
codegen_flags: <defaults>
</compile_context>

<pallas_src>
import functools

import jax
import jax.numpy as jnp
from jax import lax
from jax.experimental import pallas as pl
from jax.experimental.pallas import tpu as pltpu


def _round_up(x, m):
    return ((x + m - 1) // m) * m


def _block_diag(w, g):
    """Expand (D, D) -> (g*D, g*D) block-diagonal (identity for g == 1)."""
    if g == 1:
        return w
    return jnp.kron(jnp.eye(g, dtype=w.dtype), w)


def _mxu_lane_width():
    """256 on v6e/v7x (256x256 MXU), 128 on <=v5 generations / unknown."""
    try:
        kind = jax.devices()[0].device_kind.lower()
    except Exception:
        return 128
    if any(tag in kind for tag in ("v2", "v3", "v4", "v5")):
        return 128
    return 256


def _pick_group(d, mxu_w):
    """Tokens packed per lane row: prefer the MXU width, fall back to 128."""
    for w in (mxu_w, 128):
        if d <= w and w % d == 0:
            return w // d
    return 1   # D itself is the (possibly unaligned) lane width


def _fusion_kernel(img_ref, pc_ref, *refs, num_layers, eps, fuse_first):
    """refs = (mats..., vecs, out[, cat_scratch]).

    mats = [W0_stacked] (wide MXU) or [W0_img, W0_pc], then hidden W_l, then
           the block-of-(1/D) LayerNorm reduction matrix.  All compute dtype.
    vecs = (num_layers + 2, Dd) f32 rows: b_0 .. b_{L-1}, gamma, beta.
    """
    if fuse_first:
        cat_ref = refs[-1]
        refs = refs[:-1]
    out_ref = refs[-1]
    vec_ref = refs[-2]
    mats = refs[:-2]

    # ---- Layer 0: Linear(2D -> D) on the (virtually) concatenated feature ---
    if fuse_first:
        dd = img_ref.shape[-1]
        cat_ref[:, :dd] = img_ref[...]
        cat_ref[:, dd:] = pc_ref[...]
        h = jnp.dot(cat_ref[...], mats[0][...],
                    preferred_element_type=jnp.float32)
        idx = 1
    else:
        # [img, pc] @ W0 == img @ W0[:D] + pc @ W0[D:]  (no lane-axis concat)
        h = (jnp.dot(img_ref[...], mats[0][...],
                     preferred_element_type=jnp.float32)
             + jnp.dot(pc_ref[...], mats[1][...],
                       preferred_element_type=jnp.float32))
        idx = 2
    h = h + vec_ref[0:1, :]

    # ---- Hidden layers: ReLU -> (Dropout: identity) -> Linear(D -> D) -------
    for l in range(1, num_layers):
        h = jnp.maximum(h, 0.0)
        # TODO(synk): training-mode dropout (p > 0) not implemented (identity).
        w = mats[idx][...]
        idx += 1
        h = jnp.dot(h.astype(w.dtype), w,
                    preferred_element_type=jnp.float32) + vec_ref[l:l + 1, :]

    # ---- LayerNorm over each D-wide feature group ----------------------------
    ones_s = mats[idx][...]                              # (Dd, Dd) block of 1/D
    gamma = vec_ref[num_layers:num_layers + 1, :]
    beta = vec_ref[num_layers + 1:num_layers + 2, :]

    hb = h.astype(ones_s.dtype)
    hsq = hb * hb
    # Two back-to-back MXU reductions (group-sum AND broadcast in one matmul):
    mean = jnp.dot(hb, ones_s, preferred_element_type=jnp.float32)    # E[x]
    ex2 = jnp.dot(hsq, ones_s, preferred_element_type=jnp.float32)    # E[x^2]
    var = jnp.maximum(ex2 - mean * mean, 0.0)
    y = (h - mean) * lax.rsqrt(var + eps)
    out_ref[...] = (y * gamma + beta).astype(out_ref.dtype)


def pointcloud_image_fusion(image_feature, point_cloud_feature, layer_params,
                            gamma, beta, *, eps=1e-5,
                            compute_dtype=jnp.bfloat16):
    """image_feature, point_cloud_feature: [B, S, D]; returns [B, S, D]."""
    B, S, D = image_feature.shape
    M = B * S
    out_dtype = image_feature.dtype
    num_layers = len(layer_params)

    mxu_w = _mxu_lane_width()
    wide = mxu_w >= 256

    # Pack G tokens per lane row so every load/store and MXU operand is
    # lane-dense and matches the MXU width of this chip generation.
    G = _pick_group(D, mxu_w)
    Dd = G * D
    fuse_first = wide and (Dd % 128 == 0)

    # Pad tokens only up to a multiple of G (<= G - 1 rows, usually zero).
    M_tok = _round_up(M, G)
    Md = M_tok // G                                     # dense rows
    img2 = image_feature.reshape(M, D).astype(compute_dtype)
    pc2 = point_cloud_feature.reshape(M, D).astype(compute_dtype)
    if M_tok != M:
        pad = ((0, M_tok - M), (0, 0))
        img2 = jnp.pad(img2, pad)
        pc2 = jnp.pad(pc2, pad)
    img_d = img2.reshape(Md, Dd)                        # free row-major reshape
    pc_d = pc2.reshape(Md, Dd)

    # ---- Row tile: amortize per-step overhead, fit the default scoped-VMEM
    # limit (16 MiB <=v5, 32 MiB v6e/v7x), keep >= 2 grid steps when there is
    # enough work (v7x has 2 TensorCores; 2+ steps also overlaps DMA/compute).
    out_isz = jnp.dtype(out_dtype).itemsize
    per_row = Dd * (8 + 2 * out_isz + 24 + (4 if fuse_first else 0))
    budget = (20 << 20) if wide else (10 << 20)
    tg_cap = max(8, ((budget // per_row) // 8) * 8)
    tg_target = 1536 if wide else 1024
    if Md < 8:
        tg = Md                                         # full-dim block
    else:
        tg = min(tg_target, tg_cap)
        if Md >= 16:                                    # keep >= 2 grid steps
            tg = min(tg, _round_up(pl.cdiv(Md, 2), 8))
        tg = max(8, min(tg, (Md // 8) * 8))
    grid = (pl.cdiv(Md, tg),)                           # partial last block OK

    # ---- One-time parameter prep: bf16 cast, W0 split/stack, block-diag kron,
    # fold 1/D into the reduction matrix, merge all bias/scale vectors. --------
    w0, b0 = layer_params[0]
    w0 = w0.astype(compute_dtype)
    if fuse_first:
        mats = [jnp.concatenate([_block_diag(w0[:D, :], G),
                                 _block_diag(w0[D:, :], G)], axis=0)]
    else:
        mats = [_block_diag(w0[:D, :], G), _block_diag(w0[D:, :], G)]
    vec_rows = [jnp.tile(b0.astype(jnp.float32), G)]
    for (w, b) in layer_params[1:]:
        mats.append(_block_diag(w.astype(compute_dtype), G))
        vec_rows.append(jnp.tile(b.astype(jnp.float32), G))
    mats.append(_block_diag(jnp.full((D, D), 1.0 / D, compute_dtype), G))
    vec_rows.append(jnp.tile(gamma.astype(jnp.float32), G))
    vec_rows.append(jnp.tile(beta.astype(jnp.float32), G))
    vecs = jnp.stack(vec_rows, axis=0)                  # (num_layers + 2, Dd)

    in_specs = [
        pl.BlockSpec((tg, Dd), lambda i: (i, 0)),       # image tokens
        pl.BlockSpec((tg, Dd), lambda i: (i, 0)),       # point-cloud tokens
    ]
    for p in mats:
        in_specs.append(pl.BlockSpec(p.shape, lambda i: (0, 0)))
    in_specs.append(pl.BlockSpec(vecs.shape, lambda i: (0, 0)))

    param_bytes = sum(int(p.size) * jnp.dtype(p.dtype).itemsize
                      for p in mats + [vecs])
    cost = pl.CostEstimate(
        flops=int(2 * Md * Dd * Dd * (num_layers + 3)),
        transcendentals=int(Md * Dd),
        bytes_accessed=int(2 * Md * Dd * jnp.dtype(compute_dtype).itemsize
                           + Md * Dd * out_isz + param_bytes),
    )

    scratch_shapes = ([pltpu.VMEM((tg, 2 * Dd), compute_dtype)]
                      if fuse_first else [])

    out = pl.pallas_call(
        functools.partial(_fusion_kernel, num_layers=num_layers, eps=eps,
                          fuse_first=fuse_first),
        out_shape=jax.ShapeDtypeStruct((Md, Dd), out_dtype),
        grid=grid,
        in_specs=in_specs,
        out_specs=pl.BlockSpec((tg, Dd), lambda i: (i, 0)),
        scratch_shapes=scratch_shapes,
        compiler_params=pltpu.CompilerParams(
            dimension_semantics=("parallel",)),
        cost_estimate=cost,
    )(img_d, pc_d, *mats, vecs)

    out = out.reshape(M_tok, D)
    if M_tok != M:
        out = out[:M]
    return out.reshape(B, S, D)


def _reference(image_feature, point_cloud_feature, layer_params, gamma, beta,
               eps=1e-5):
    x = jnp.concatenate([image_feature, point_cloud_feature],
                        axis=-1).astype(jnp.float32)
    L = len(layer_params)
    for l, (w, b) in enumerate(layer_params):
        x = x @ w.astype(jnp.float32) + b.astype(jnp.float32)
        if l != L - 1:
            x = jnp.maximum(x, 0.0)
    mean = jnp.mean(x, axis=-1, keepdims=True)
    var = jnp.mean(jnp.square(x - mean), axis=-1, keepdims=True)
    y = (x - mean) * lax.rsqrt(var + eps)
    return y * gamma.astype(jnp.float32) + beta.astype(jnp.float32)


if __name__ == "__main__":
    # Small config implied by the module: args.vis_out_dim = D, linear_layer_num = 2.
    B, S, D = 2, 8, 32
    L = 2
    key = jax.random.PRNGKey(0)
    k_img, k_pc, k_w0, k_b0, k_w1, k_b1 = jax.random.split(key, 6)

    def bf16_round(x):
        # bf16-representable values: the f32 reference then tracks the kernel's
        # bf16 compute path closely (only in-kernel intermediate casts differ).
        return x.astype(jnp.bfloat16).astype(jnp.float32)

    image_feature = bf16_round(jax.random.normal(k_img, (B, S, D), jnp.float32))
    point_cloud_feature = bf16_round(
        jax.random.normal(k_pc, (B, S, D), jnp.float32))

    w0 = bf16_round(jax.random.normal(k_w0, (2 * D, D), jnp.float32) * 0.05)
    b0 = jax.random.normal(k_b0, (D,), jnp.float32) * 0.01
    w1 = bf16_round(jax.random.normal(k_w1, (D, D), jnp.float32) * 0.05)
    b1 = jax.random.normal(k_b1, (D,), jnp.float32) * 0.01
    layer_params = [(w0, b0), (w1, b1)][:L]

    gamma = jnp.ones((D,), jnp.float32)    # LayerNorm weight
    beta = jnp.zeros((D,), jnp.float32)    # LayerNorm bias

    out = pointcloud_image_fusion(image_feature, point_cloud_feature,
                                  layer_params, gamma, beta)
    out = jax.block_until_ready(out)

    ref = _reference(image_feature, point_cloud_feature, layer_params,
                     gamma, beta)
    assert out.shape == (B, S, D)
    assert bool(jnp.all(jnp.isfinite(out))), "non-finite kernel output"
    max_diff = float(jnp.max(jnp.abs(out - ref)))
    assert jnp.allclose(out, ref, atol=3e-2, rtol=3e-2), (
        f"kernel output mismatch: max abs diff = {max_diff}")
    print("KERNEL_OK")
</pallas_src>

<mosaic_0001>
module attributes {stable_mosaic.version = 11 : i64} {
  func.func @_fusion_kernel(%arg0: i32, %arg1: memref<2x256xbf16, #tpu.memory_space<vmem>>, %arg2: memref<2x256xbf16, #tpu.memory_space<vmem>>, %arg3: memref<512x256xbf16, #tpu.memory_space<vmem>>, %arg4: memref<256x256xbf16, #tpu.memory_space<vmem>>, %arg5: memref<256x256xbf16, #tpu.memory_space<vmem>>, %arg6: memref<4x256xf32, #tpu.memory_space<vmem>>, %arg7: memref<2x256xf32, #tpu.memory_space<vmem>>, %arg8: memref<2x512xbf16, #tpu.memory_space<vmem>>) attributes {dimension_semantics = [#tpu.dimension_semantics<parallel>], iteration_bounds = array<i64: 1>, scalar_prefetch = 0 : i64, scratch_operands = 1 : i64, tpu.core_type = #tpu.core_type<tc>, window_params = [{transform_indices = @transform_0, window_bounds = array<i64: 2, 256>}, {transform_indices = @transform_1, window_bounds = array<i64: 2, 256>}, {pipeline_mode = #tpu.pipeline_mode<synchronous>, transform_indices = @transform_2, window_bounds = array<i64: 512, 256>}, {pipeline_mode = #tpu.pipeline_mode<synchronous>, transform_indices = @transform_3, window_bounds = array<i64: 256, 256>}, {pipeline_mode = #tpu.pipeline_mode<synchronous>, transform_indices = @transform_4, window_bounds = array<i64: 256, 256>}, {pipeline_mode = #tpu.pipeline_mode<synchronous>, transform_indices = @transform_5, window_bounds = array<i64: 4, 256>}, {transform_indices = @transform_6, window_bounds = array<i64: 2, 256>}]} {
    %c0 = arith.constant 0 : index
    %c0_0 = arith.constant 0 : index
    %0 = vector.load %arg1[%c0, %c0_0] : memref<2x256xbf16, #tpu.memory_space<vmem>>, vector<2x256xbf16>
    %c0_1 = arith.constant 0 : index
    %c0_2 = arith.constant 0 : index
    %1 = vector.load %arg8[%c0_1, %c0_2] : memref<2x512xbf16, #tpu.memory_space<vmem>>, vector<2x256xbf16>
    tpu.vector_store %arg8[%c0_1, %c0_2], %0 {strides = array<i32>} : memref<2x512xbf16, #tpu.memory_space<vmem>>, vector<2x256xbf16>,
    %c0_3 = arith.constant 0 : index
    %c0_4 = arith.constant 0 : index
    %2 = vector.load %arg2[%c0_3, %c0_4] : memref<2x256xbf16, #tpu.memory_space<vmem>>, vector<2x256xbf16>
    %c0_5 = arith.constant 0 : index
    %c256 = arith.constant 256 : index
    %3 = vector.load %arg8[%c0_5, %c256] : memref<2x512xbf16, #tpu.memory_space<vmem>>, vector<2x256xbf16>
    tpu.vector_store %arg8[%c0_5, %c256], %2 {strides = array<i32>} : memref<2x512xbf16, #tpu.memory_space<vmem>>, vector<2x256xbf16>,
    %c0_6 = arith.constant 0 : index
    %c0_7 = arith.constant 0 : index
    %4 = vector.load %arg8[%c0_6, %c0_7] : memref<2x512xbf16, #tpu.memory_space<vmem>>, vector<2x512xbf16>
    %c0_8 = arith.constant 0 : index
    %c0_9 = arith.constant 0 : index
    %5 = vector.load %arg3[%c0_8, %c0_9] : memref<512x256xbf16, #tpu.memory_space<vmem>>, vector<512x256xbf16>
    %cst = arith.constant dense<0.000000e+00> : vector<2x256xf32>
    %6 = tpu.matmul %4, %5, %cst {dimension_numbers = #tpu.dot_dimension_numbers<[1], [0], [0], [1], [0, 0, 1, 1], [], []>} : vector<2x512xbf16>, vector<512x256xbf16>, vector<2x256xf32> -> vector<2x256xf32>
    %c0_10 = arith.constant 0 : index
    %c0_11 = arith.constant 0 : index
    %7 = vector.load %arg6[%c0_10, %c0_11] : memref<4x256xf32, #tpu.memory_space<vmem>>, vector<1x256xf32>
    %8 = vector.broadcast %7 : vector<1x256xf32> to vector<2x256xf32>
    %9 = arith.addf %6, %8 : vector<2x256xf32>
    %cst_12 = arith.constant 0.000000e+00 : f32
    %10 = vector.broadcast %cst_12 : f32 to vector<2x256xf32>
    %11 = arith.maximumf %9, %10 : vector<2x256xf32>
    %c0_13 = arith.constant 0 : index
    %c0_14 = arith.constant 0 : index
    %12 = vector.load %arg4[%c0_13, %c0_14] : memref<256x256xbf16, #tpu.memory_space<vmem>>, vector<256x256xbf16>
    %13 = arith.truncf %11 : vector<2x256xf32> to vector<2x256xbf16>
    %cst_15 = arith.constant dense<0.000000e+00> : vector<2x256xf32>
    %14 = tpu.matmul %13, %12, %cst_15 {dimension_numbers = #tpu.dot_dimension_numbers<[1], [0], [0], [1], [0, 0, 1, 1], [], []>} : vector<2x256xbf16>, vector<256x256xbf16>, vector<2x256xf32> -> vector<2x256xf32>
    %c1 = arith.constant 1 : index
    %c0_16 = arith.constant 0 : index
    %15 = vector.load %arg6[%c1, %c0_16] : memref<4x256xf32, #tpu.memory_space<vmem>>, vector<1x256xf32>
    %16 = vector.broadcast %15 : vector<1x256xf32> to vector<2x256xf32>
    %17 = arith.addf %14, %16 : vector<2x256xf32>
    %c0_17 = arith.constant 0 : index
    %c0_18 = arith.constant 0 : index
    %18 = vector.load %arg5[%c0_17, %c0_18] : memref<256x256xbf16, #tpu.memory_space<vmem>>, vector<256x256xbf16>
    %c2 = arith.constant 2 : index
    %c0_19 = arith.constant 0 : index
    %19 = vector.load %arg6[%c2, %c0_19] : memref<4x256xf32, #tpu.memory_space<vmem>>, vector<1x256xf32>
    %c3 = arith.constant 3 : index
    %c0_20 = arith.constant 0 : index
    %20 = vector.load %arg6[%c3, %c0_20] : memref<4x256xf32, #tpu.memory_space<vmem>>, vector<1x256xf32>
    %21 = arith.truncf %17 : vector<2x256xf32> to vector<2x256xbf16>
    %22 = arith.mulf %21, %21 : vector<2x256xbf16>
    %cst_21 = arith.constant dense<0.000000e+00> : vector<2x256xf32>
    %23 = tpu.matmul %21, %18, %cst_21 {dimension_numbers = #tpu.dot_dimension_numbers<[1], [0], [0], [1], [0, 0, 1, 1], [], []>} : vector<2x256xbf16>, vector<256x256xbf16>, vector<2x256xf32> -> vector<2x256xf32>
    %cst_22 = arith.constant dense<0.000000e+00> : vector<2x256xf32>
    %24 = tpu.matmul %22, %18, %cst_22 {dimension_numbers = #tpu.dot_dimension_numbers<[1], [0], [0], [1], [0, 0, 1, 1], [], []>} : vector<2x256xbf16>, vector<256x256xbf16>, vector<2x256xf32> -> vector<2x256xf32>
    %25 = arith.mulf %23, %23 : vector<2x256xf32>
    %26 = arith.subf %24, %25 : vector<2x256xf32>
    %cst_23 = arith.constant 0.000000e+00 : f32
    %27 = vector.broadcast %cst_23 : f32 to vector<2x256xf32>
    %28 = arith.maximumf %26, %27 : vector<2x256xf32>
    %29 = arith.subf %17, %23 : vector<2x256xf32>
    %cst_24 = arith.constant 9.99999974E-6 : f32
    %30 = vector.broadcast %cst_24 : f32 to vector<2x256xf32>
    %31 = arith.addf %28, %30 : vector<2x256xf32>
    %32 = math.rsqrt %31 : vector<2x256xf32>
    %33 = arith.mulf %29, %32 : vector<2x256xf32>
    %34 = vector.broadcast %19 : vector<1x256xf32> to vector<2x256xf32>
    %35 = arith.mulf %33, %34 : vector<2x256xf32>
    %36 = vector.broadcast %20 : vector<1x256xf32> to vector<2x256xf32>
    %37 = arith.addf %35, %36 : vector<2x256xf32>
    %c0_25 = arith.constant 0 : index
    %c0_26 = arith.constant 0 : index
    %38 = vector.load %arg7[%c0_25, %c0_26] : memref<2x256xf32, #tpu.memory_space<vmem>>, vector<2x256xf32>
    tpu.vector_store %arg7[%c0_25, %c0_26], %37 {strides = array<i32>} : memref<2x256xf32, #tpu.memory_space<vmem>>, vector<2x256xf32>,
    return
  }
  func.func @transform_0(%arg0: i32) -> (i32, i32) {
    %c0_i32 = arith.constant 0 : i32
    %c0_i32_0 = arith.constant 0 : i32
    return %arg0, %c0_i32 : i32, i32
  }
  func.func @transform_1(%arg0: i32) -> (i32, i32) {
    %c0_i32 = arith.constant 0 : i32
    %c0_i32_0 = arith.constant 0 : i32
    return %arg0, %c0_i32 : i32, i32
  }
  func.func @transform_2(%arg0: i32) -> (i32, i32) {
    %c0_i32 = arith.constant 0 : i32
    %c0_i32_0 = arith.constant 0 : i32
    %c0_i32_1 = arith.constant 0 : i32
    return %c0_i32, %c0_i32_0 : i32, i32
  }
  func.func @transform_3(%arg0: i32) -> (i32, i32) {
    %c0_i32 = arith.constant 0 : i32
    %c0_i32_0 = arith.constant 0 : i32
    %c0_i32_1 = arith.constant 0 : i32
    return %c0_i32, %c0_i32_0 : i32, i32
  }
  func.func @transform_4(%arg0: i32) -> (i32, i32) {
    %c0_i32 = arith.constant 0 : i32
    %c0_i32_0 = arith.constant 0 : i32
    %c0_i32_1 = arith.constant 0 : i32
    return %c0_i32, %c0_i32_0 : i32, i32
  }
  func.func @transform_5(%arg0: i32) -> (i32, i32) {
    %c0_i32 = arith.constant 0 : i32
    %c0_i32_0 = arith.constant 0 : i32
    %c0_i32_1 = arith.constant 0 : i32
    return %c0_i32, %c0_i32_0 : i32, i32
  }
  func.func @transform_6(%arg0: i32) -> (i32, i32) {
    %c0_i32 = arith.constant 0 : i32
    %c0_i32_0 = arith.constant 0 : i32
    return %arg0, %c0_i32 : i32, i32
  }
}

</mosaic_0001>

<llo_original>
// kernel: tpu_custom_call.1
$region0: #{tpu_custom_call.1}
  #allocation0 [shape = 'u32[]', space=smem, size = 0x4, offset = 0x4, fixed_abs, tag = 'smem constant byte address 0x4 - core index']
  #allocation1 [shape = 'u32[144,128]{1,0:T(1,128)}', space=vmem, size = 0x12000, scoped, tag = 'internal scratch']
  #allocation2 [shape = 'bf16[2,512]{1,0:T(2,128)(2,1)}', space=vmem, size = 0x800, scoped, tag = 'scratch operand']
  %s0 = inlined_call_operand.hbm [shape: bf16[2,256], index: 0, kind: input, shape index: {}]
  %s1 = inlined_call_operand.vmem [shape: bf16[2,256], index: 1, kind: input, shape index: {}]
  %s2 = inlined_call_operand.hbm [shape: bf16[512,256], index: 2, kind: input, shape index: {}]
  %s3 = inlined_call_operand.hbm [shape: bf16[256,256], index: 3, kind: input, shape index: {}]
  %s4 = inlined_call_operand.hbm [shape: bf16[256,256], index: 4, kind: input, shape index: {}]
  %s5 = inlined_call_operand.vmem [shape: f32[4,256], index: 5, kind: input, shape index: {}]
  %s6 = inlined_call_operand.hbm [shape: f32[2,256], index: 6, kind: output, shape index: {}]
  %s7 = sld [smem:[#allocation0]]
  $region50: #{tpu_custom_call.1} parent=0
    _
  %s9 = ssub.s32 1, %s7
  %s10 = scalar_select 0, %s9, %s7
  $region1: #{tpu_custom_call.1} parent=0
    #allocation3 [shape = 'u8[1024]{0}', space=vmem, size = 0x400, scoped, tag = 'input window, operand 0, single buffered']
    #allocation4 [shape = 's32[1]{0}', space=sflag, size = 0x4, scoped, tag = 'scoped memory for tpu_custom_call.1']
    #allocation5 [shape = 's32[1]{0}', space=sflag, size = 0x4, scoped, tag = 'scoped memory for tpu_custom_call.1']
    #allocation6 [shape = 'u8[262144]{0}', space=vmem, size = 0x40000, scoped, tag = 'input window, operand 2, single buffered']
    #allocation7 [shape = 's32[1]{0}', space=sflag, size = 0x4, scoped, tag = 'scoped memory for tpu_custom_call.1']
    #allocation8 [shape = 'u8[131072]{0}', space=vmem, size = 0x20000, scoped, tag = 'input window, operand 3, single buffered']
    #allocation9 [shape = 'u8[131072]{0}', space=vmem, size = 0x20000, scoped, tag = 'input window, operand 4, single buffered']
    #allocation10 [shape = 's32[1]{0}', space=sflag, size = 0x4, scoped, tag = 'scoped memory for tpu_custom_call.1']
    #allocation11 [shape = 'u8[2048]{0}', space=vmem, size = 0x800, scoped, tag = 'output window, operand 0, single buffered']
    %11 = vsyncpa [#allocation4], 0
    %12 = vsyncpa [#allocation7], 0
    %13 = vsyncpa [#allocation10], 0
    %14 = vsyncpa [#allocation5], 0
    // Predicated region
    $region2: #{tpu_custom_call.1} parent=1 // pred_check
      _
    $region3: #{tpu_custom_call.1} parent=1 // pred_check_branch
      %16 = sbr.rel (0) target = $region5
    $region4: #{tpu_custom_call.1} parent=1 // pred_region
      %s18 = ssub.s32 32, 32
      %19 = vsyncadd [#allocation4], %s18
      %s21 = sshll.u32 [#allocation3], 4
      %s22 = int_to_ptr.vmem [resolvable:$true] %s21
      %24 = dma.hbm_to_vmem [thread:$0]  %s0, 32, %s22, [#allocation4]
    $region5: #{tpu_custom_call.1} parent=1 // pred_fallthru
      _
    // Predicated region
    $region6: #{tpu_custom_call.1} parent=1 // pred_check
      _
    $region7: #{tpu_custom_call.1} parent=1 // pred_check_branch
      %26 = sbr.rel (0) target = $region9
    $region8: #{tpu_custom_call.1} parent=1 // pred_region
      _
    $region9: #{tpu_custom_call.1} parent=1 // pred_fallthru
      _
    // Predicated region
    $region10: #{tpu_custom_call.1} parent=1 // pred_check
      _
    $region11: #{tpu_custom_call.1} parent=1 // pred_check_branch
      %28 = sbr.rel (0) target = $region13
    $region12: #{tpu_custom_call.1} parent=1 // pred_region
      %s30 = ssub.s32 8192, 8192
      %31 = vsyncadd [#allocation7], %s30
      %s32 = sshll.u32 [#allocation6], 4
      %s33 = int_to_ptr.vmem [resolvable:$true] %s32
      %38 = dma.hbm_to_vmem [thread:$0]  %s2, 8192, %s33, [#allocation7], 128, 128, 8
    $region13: #{tpu_custom_call.1} parent=1 // pred_fallthru
      _
    // Predicated region
    $region14: #{tpu_custom_call.1} parent=1 // pred_check
      _
    $region15: #{tpu_custom_call.1} parent=1 // pred_check_branch
      %40 = sbr.rel (0) target = $region17
    $region16: #{tpu_custom_call.1} parent=1 // pred_region
      %s42 = ssub.s32 4096, 4096
      %43 = vsyncadd [#allocation7], %s42
      %s44 = sshll.u32 [#allocation8], 4
      %s45 = int_to_ptr.vmem [resolvable:$true] %s44
      %50 = dma.hbm_to_vmem [thread:$0]  %s3, 4096, %s45, [#allocation7], 128, 128, 8
    $region17: #{tpu_custom_call.1} parent=1 // pred_fallthru
      _
    // Predicated region
    $region18: #{tpu_custom_call.1} parent=1 // pred_check
      _
    $region19: #{tpu_custom_call.1} parent=1 // pred_check_branch
      %52 = sbr.rel (0) target = $region21
    $region20: #{tpu_custom_call.1} parent=1 // pred_region
      %s54 = ssub.s32 4096, 4096
      %55 = vsyncadd [#allocation10], %s54
      %s56 = sshll.u32 [#allocation9], 4
      %s57 = int_to_ptr.vmem [resolvable:$true] %s56
      %62 = dma.hbm_to_vmem [thread:$0]  %s4, 4096, %s57, [#allocation10], 128, 128, 8
    $region21: #{tpu_custom_call.1} parent=1 // pred_fallthru
      _
    // Predicated region
    $region22: #{tpu_custom_call.1} parent=1 // pred_check
      _
    $region23: #{tpu_custom_call.1} parent=1 // pred_check_branch
      %64 = sbr.rel (0) target = $region25
    $region24: #{tpu_custom_call.1} parent=1 // pred_region
      _
    $region25: #{tpu_custom_call.1} parent=1 // pred_fallthru
      _
    // Predicated region
    $region26: #{tpu_custom_call.1} parent=1 // pred_check
      _
    $region27: #{tpu_custom_call.1} parent=1 // pred_check_branch
      %66 = sbr.rel (0) target = $region29
    $region28: #{tpu_custom_call.1} parent=1 // pred_region
      %67 = dma.done [#allocation4], 32
    $region29: #{tpu_custom_call.1} parent=1 // pred_fallthru
      _
    // Predicated region
    $region30: #{tpu_custom_call.1} parent=1 // pred_check
      _
    $region31: #{tpu_custom_call.1} parent=1 // pred_check_branch
      %69 = sbr.rel (0) target = $region33
    $region32: #{tpu_custom_call.1} parent=1 // pred_region
      %70 = dma.done [#allocation7], 8192
    $region33: #{tpu_custom_call.1} parent=1 // pred_fallthru
      _
    // Predicated region
    $region34: #{tpu_custom_call.1} parent=1 // pred_check
      _
    $region35: #{tpu_custom_call.1} parent=1 // pred_check_branch
      %72 = sbr.rel (0) target = $region37
    $region36: #{tpu_custom_call.1} parent=1 // pred_region
      %73 = dma.done [#allocation7], 4096
    $region37: #{tpu_custom_call.1} parent=1 // pred_fallthru
      _
    // Predicated region
    $region38: #{tpu_custom_call.1} parent=1 // pred_check
      _
    $region39: #{tpu_custom_call.1} parent=1 // pred_check_branch
      %75 = sbr.rel (0) target = $region41
    $region40: #{tpu_custom_call.1} parent=1 // pred_region
      %76 = dma.done [#allocation10], 4096
    $region41: #{tpu_custom_call.1} parent=1 // pred_fallthru
      _
    %v77 = vld [vmem:[#allocation3] sm:$0x3]
    %78 = vst [vmem:[#allocation2] sm:$0x3] %v77
    %v79 = vld [vmem:[%s1] sm:$0x3]
    %80 = vst [vmem:[#allocation2 + $0x2] sm:$0x3] %v79
    %v81 = vld [vmem:[#allocation2] sm:$0xf]
    %v82 = vld [vmem:[#allocation6] sm:$0xff]
    %v83 = vld [vmem:[#allocation6 + $0x8] sm:$0xff]
    %v84 = vld [vmem:[#allocation6 + $0x10] sm:$0xff]
    %v85 = vld [vmem:[#allocation6 + $0x18] sm:$0xff]
    %v86 = vld [vmem:[#allocation6 + $0x20] sm:$0xff]
    %v87 = vld [vmem:[#allocation6 + $0x28] sm:$0xff]
    %v88 = vld [vmem:[#allocation6 + $0x30] sm:$0xff]
    %v89 = vld [vmem:[#allocation6 + $0x38] sm:$0xff]
    %v90 = vld [vmem:[#allocation6 + $0x40] sm:$0xff]
    %v91 = vld [vmem:[#allocation6 + $0x48] sm:$0xff]
    %v92 = vld [vmem:[#allocation6 + $0x50] sm:$0xff]
    %v93 = vld [vmem:[#allocation6 + $0x58] sm:$0xff]
    %v94 = vld [vmem:[#allocation6 + $0x60] sm:$0xff]
    %v95 = vld [vmem:[#allocation6 + $0x68] sm:$0xff]
    %v96 = vld [vmem:[#allocation6 + $0x70] sm:$0xff]
    %v97 = vld [vmem:[#allocation6 + $0x78] sm:$0xff]
    %v98 = vld [vmem:[#allocation6 + $0x80] sm:$0xff]
    %v99 = vld [vmem:[#allocation6 + $0x88] sm:$0xff]
    %v100 = vld [vmem:[#allocation6 + $0x90] sm:$0xff]
    %v101 = vld [vmem:[#allocation6 + $0x98] sm:$0xff]
    %v102 = vld [vmem:[#allocation6 + $0xa0] sm:$0xff]
    %v103 = vld [vmem:[#allocation6 + $0xa8] sm:$0xff]
    %v104 = vld [vmem:[#allocation6 + $0xb0] sm:$0xff]
    %v105 = vld [vmem:[#allocation6 + $0xb8] sm:$0xff]
    %v106 = vld [vmem:[#allocation6 + $0xc0] sm:$0xff]
    %v107 = vld [vmem:[#allocation6 + $0xc8] sm:$0xff]
    %v108 = vld [vmem:[#allocation6 + $0xd0] sm:$0xff]
    %v109 = vld [vmem:[#allocation6 + $0xd8] sm:$0xff]
    %v110 = vld [vmem:[#allocation6 + $0xe0] sm:$0xff]
    %v111 = vld [vmem:[#allocation6 + $0xe8] sm:$0xff]
    %v112 = vld [vmem:[#allocation6 + $0xf0] sm:$0xff]
    %v113 = vld [vmem:[#allocation6 + $0xf8] sm:$0xff]
    %v114 = vld [vmem:[#allocation6 + $0x100] sm:$0xff]
    %v115 = vld [vmem:[#allocation6 + $0x108] sm:$0xff]
    %v116 = vld [vmem:[#allocation6 + $0x110] sm:$0xff]
    %v117 = vld [vmem:[#allocation6 + $0x118] sm:$0xff]
    %v118 = vld [vmem:[#allocation6 + $0x120] sm:$0xff]
    %v119 = vld [vmem:[#allocation6 + $0x128] sm:$0xff]
    %v120 = vld [vmem:[#allocation6 + $0x130] sm:$0xff]
    %v121 = vld [vmem:[#allocation6 + $0x138] sm:$0xff]
    %v122 = vld [vmem:[#allocation6 + $0x140] sm:$0xff]
    %v123 = vld [vmem:[#allocation6 + $0x148] sm:$0xff]
    %v124 = vld [vmem:[#allocation6 + $0x150] sm:$0xff]
    %v125 = vld [vmem:[#allocation6 + $0x158] sm:$0xff]
    %v126 = vld [vmem:[#allocation6 + $0x160] sm:$0xff]
    %v127 = vld [vmem:[#allocation6 + $0x168] sm:$0xff]
    %v128 = vld [vmem:[#allocation6 + $0x170] sm:$0xff]
    %v129 = vld [vmem:[#allocation6 + $0x178] sm:$0xff]
    %v130 = vld [vmem:[#allocation6 + $0x180] sm:$0xff]
    %v131 = vld [vmem:[#allocation6 + $0x188] sm:$0xff]
    %v132 = vld [vmem:[#allocation6 + $0x190] sm:$0xff]
    %v133 = vld [vmem:[#allocation6 + $0x198] sm:$0xff]
    %v134 = vld [vmem:[#allocation6 + $0x1a0] sm:$0xff]
    %v135 = vld [vmem:[#allocation6 + $0x1a8] sm:$0xff]
    %v136 = vld [vmem:[#allocation6 + $0x1b0] sm:$0xff]
    %v137 = vld [vmem:[#allocation6 + $0x1b8] sm:$0xff]
    %v138 = vld [vmem:[#allocation6 + $0x1c0] sm:$0xff]
    %v139 = vld [vmem:[#allocation6 + $0x1c8] sm:$0xff]
    %v140 = vld [vmem:[#allocation6 + $0x1d0] sm:$0xff]
    %v141 = vld [vmem:[#allocation6 + $0x1d8] sm:$0xff]
    %v142 = vld [vmem:[#allocation6 + $0x1e0] sm:$0xff]
    %v143 = vld [vmem:[#allocation6 + $0x1e8] sm:$0xff]
    %v144 = vld [vmem:[#allocation6 + $0x1f0] sm:$0xff]
    %v145 = vld [vmem:[#allocation6 + $0x1f8] sm:$0xff]
    %v146 = vld [vmem:[%s5] ss:$4 sm:$0x3]
    %v148 = vlaneseq
    %v149 = vshrl.u32 %v148, 7
    %v150 = vsub.s32 0, %v149
    %v151 = vrot.slane %v146, %v150
    %v152 = vlaneseq
    %v153 = vshrl.u32 %v152, 7
    %v154 = vsub.s32 1, %v153
    %v155 = vrot.slane %v146, %v154
    %v160 = vunpack.c.l.s4 1966171168
    %v161 = vunpack.c.0.s8 %v160
    %v162 = vlaneseq
    %v163 = vshrl.u32 %v162, 7
    %v164 = vsub.s32 %v161, %v163
    %v165 = vrot.slane %v81, %v164
    %v166 = vcombine.high %v165, %v165
    %v168 = vunpack.c.l.s4 1966171168
    %v169 = vunpack.c.0.s8 %v168
    %v170 = vlaneseq
    %v171 = vshrl.u32 %v170, 7
    %v172 = vsub.s32 %v169, %v171
    %v173 = vrot.slane %v165, %v172
    %v175 = vunpack.c.l.s4 1966171168
    %v176 = vunpack.c.0.s8 %v175
    %v177 = vlaneseq
    %v178 = vshrl.u32 %v177, 7
    %v179 = vsub.s32 %v176, %v178
    %v180 = vrot.slane %v166, %v179
    %v181 = vcombine.high %v173, %v173
    %v182 = vcombine.high %v180, %v180
    %v251 = vunpack.c.l.b16 %v82
    %v252 = vunpack.c.h.b16 %v82
    %v253 = vunpack.c.l.b16 %v83
    %v254 = vunpack.c.h.b16 %v83
    %v255 = vunpack.c.l.b16 %v84
    %v256 = vunpack.c.h.b16 %v84
    %v257 = vunpack.c.l.b16 %v85
    %v258 = vunpack.c.h.b16 %v85
    %v259 = vunpack.c.l.b16 %v86
    %v260 = vunpack.c.h.b16 %v86
    %v261 = vunpack.c.l.b16 %v87
    %v262 = vunpack.c.h.b16 %v87
    %v263 = vunpack.c.l.b16 %v88
    %v264 = vunpack.c.h.b16 %v88
    %v265 = vunpack.c.l.b16 %v89
    %v266 = vunpack.c.h.b16 %v89
    %v267 = vunpack.c.l.b16 %v90
    %v268 = vunpack.c.h.b16 %v90
    %v269 = vunpack.c.l.b16 %v91
    %v270 = vunpack.c.h.b16 %v91
    %v271 = vunpack.c.l.b16 %v92
    %v272 = vunpack.c.h.b16 %v92
    %v273 = vunpack.c.l.b16 %v93
    %v274 = vunpack.c.h.b16 %v93
    %v275 = vunpack.c.l.b16 %v94
    %v276 = vunpack.c.h.b16 %v94
    %v277 = vunpack.c.l.b16 %v95
    %v278 = vunpack.c.h.b16 %v95
    %v279 = vunpack.c.l.b16 %v96
    %v280 = vunpack.c.h.b16 %v96
    %v281 = vunpack.c.l.b16 %v97
    %v282 = vunpack.c.h.b16 %v97
    %v283 = vunpack.c.l.b16 %v98
    %v284 = vunpack.c.h.b16 %v98
    %v285 = vunpack.c.l.b16 %v99
    %v286 = vunpack.c.h.b16 %v99
    %v287 = vunpack.c.l.b16 %v100
    %v288 = vunpack.c.h.b16 %v100
    %v289 = vunpack.c.l.b16 %v101
    %v290 = vunpack.c.h.b16 %v101
    %v291 = vunpack.c.l.b16 %v102
    %v292 = vunpack.c.h.b16 %v102
    %v293 = vunpack.c.l.b16 %v103
    %v294 = vunpack.c.h.b16 %v103
    %v295 = vunpack.c.l.b16 %v104
    %v296 = vunpack.c.h.b16 %v104
    %v297 = vunpack.c.l.b16 %v105
    %v298 = vunpack.c.h.b16 %v105
    %v299 = vunpack.c.l.b16 %v106
    %v300 = vunpack.c.h.b16 %v106
    %v301 = vunpack.c.l.b16 %v107
    %v302 = vunpack.c.h.b16 %v107
    %v303 = vunpack.c.l.b16 %v108
    %v304 = vunpack.c.h.b16 %v108
    %v305 = vunpack.c.l.b16 %v109
    %v306 = vunpack.c.h.b16 %v109
    %v307 = vunpack.c.l.b16 %v110
    %v308 = vunpack.c.h.b16 %v110
    %v309 = vunpack.c.l.b16 %v111
    %v310 = vunpack.c.h.b16 %v111
    %v311 = vunpack.c.l.b16 %v112
    %v312 = vunpack.c.h.b16 %v112
    %v313 = vunpack.c.l.b16 %v113
    %v314 = vunpack.c.h.b16 %v113
    %v315 = vunpack.c.l.b16 %v114
    %v316 = vunpack.c.h.b16 %v114
    %v317 = vunpack.c.l.b16 %v115
    %v318 = vunpack.c.h.b16 %v115
    %v319 = vunpack.c.l.b16 %v116
    %v320 = vunpack.c.h.b16 %v116
    %v321 = vunpack.c.l.b16 %v117
    %v322 = vunpack.c.h.b16 %v117
    %v323 = vunpack.c.l.b16 %v118
    %v324 = vunpack.c.h.b16 %v118
    %v325 = vunpack.c.l.b16 %v119
    %v326 = vunpack.c.h.b16 %v119
    %v327 = vunpack.c.l.b16 %v120
    %v328 = vunpack.c.h.b16 %v120
    %v329 = vunpack.c.l.b16 %v121
    %v330 = vunpack.c.h.b16 %v121
    %v331 = vunpack.c.l.b16 %v122
    %v332 = vunpack.c.h.b16 %v122
    %v333 = vunpack.c.l.b16 %v123
    %v334 = vunpack.c.h.b16 %v123
    %v335 = vunpack.c.l.b16 %v124
    %v336 = vunpack.c.h.b16 %v124
    %v337 = vunpack.c.l.b16 %v125
    %v338 = vunpack.c.h.b16 %v125
    %v339 = vunpack.c.l.b16 %v126
    %v340 = vunpack.c.h.b16 %v126
    %v341 = vunpack.c.l.b16 %v127
    %v342 = vunpack.c.h.b16 %v127
    %v343 = vunpack.c.l.b16 %v128
    %v344 = vunpack.c.h.b16 %v128
    %v345 = vunpack.c.l.b16 %v129
    %v346 = vunpack.c.h.b16 %v129
    %v347 = vunpack.c.l.b16 %v130
    %v348 = vunpack.c.h.b16 %v130
    %v349 = vunpack.c.l.b16 %v131
    %v350 = vunpack.c.h.b16 %v131
    %v351 = vunpack.c.l.b16 %v132
    %v352 = vunpack.c.h.b16 %v132
    %v353 = vunpack.c.l.b16 %v133
    %v354 = vunpack.c.h.b16 %v133
    %v355 = vunpack.c.l.b16 %v134
    %v356 = vunpack.c.h.b16 %v134
    %v357 = vunpack.c.l.b16 %v135
    %v358 = vunpack.c.h.b16 %v135
    %v359 = vunpack.c.l.b16 %v136
    %v360 = vunpack.c.h.b16 %v136
    %v361 = vunpack.c.l.b16 %v137
    %v362 = vunpack.c.h.b16 %v137
    %v363 = vunpack.c.l.b16 %v138
    %v364 = vunpack.c.h.b16 %v138
    %v365 = vunpack.c.l.b16 %v139
    %v366 = vunpack.c.h.b16 %v139
    %v367 = vunpack.c.l.b16 %v140
    %v368 = vunpack.c.h.b16 %v140
    %v369 = vunpack.c.l.b16 %v141
    %v370 = vunpack.c.h.b16 %v141
    %v371 = vunpack.c.l.b16 %v142
    %v372 = vunpack.c.h.b16 %v142
    %v373 = vunpack.c.l.b16 %v143
    %v374 = vunpack.c.h.b16 %v143
    %v375 = vunpack.c.l.b16 %v144
    %v376 = vunpack.c.h.b16 %v144
    %v377 = vunpack.c.l.b16 %v145
    %v378 = vunpack.c.h.b16 %v145
    %v379 = vpack.c.b16 %v253, %v251
    %v380 = vpack.c.b16 %v254, %v252
    %v381 = vpack.c.b16 %v257, %v255
    %v382 = vpack.c.b16 %v258, %v256
    %v383 = vpack.c.b16 %v261, %v259
    %v384 = vpack.c.b16 %v262, %v260
    %v385 = vpack.c.b16 %v265, %v263
    %v386 = vpack.c.b16 %v266, %v264
    %v387 = vpack.c.b16 %v269, %v267
    %v388 = vpack.c.b16 %v270, %v268
    %v389 = vpack.c.b16 %v273, %v271
    %v390 = vpack.c.b16 %v274, %v272
    %v391 = vpack.c.b16 %v277, %v275
    %v392 = vpack.c.b16 %v278, %v276
    %v393 = vpack.c.b16 %v281, %v279
    %v394 = vpack.c.b16 %v282, %v280
    %v395 = vpack.c.b16 %v285, %v283
    %v396 = vpack.c.b16 %v286, %v284
    %v397 = vpack.c.b16 %v289, %v287
    %v398 = vpack.c.b16 %v290, %v288
    %v399 = vpack.c.b16 %v293, %v291
    %v400 = vpack.c.b16 %v294, %v292
    %v401 = vpack.c.b16 %v297, %v295
    %v402 = vpack.c.b16 %v298, %v296
    %v403 = vpack.c.b16 %v301, %v299
    %v404 = vpack.c.b16 %v302, %v300
    %v405 = vpack.c.b16 %v305, %v303
    %v406 = vpack.c.b16 %v306, %v304
    %v407 = vpack.c.b16 %v309, %v307
    %v408 = vpack.c.b16 %v310, %v308
    %v409 = vpack.c.b16 %v313, %v311
    %v410 = vpack.c.b16 %v314, %v312
    %v411 = vpack.c.b16 %v317, %v315
    %v412 = vpack.c.b16 %v318, %v316
    %v413 = vpack.c.b16 %v321, %v319
    %v414 = vpack.c.b16 %v322, %v320
    %v415 = vpack.c.b16 %v325, %v323
    %v416 = vpack.c.b16 %v326, %v324
    %v417 = vpack.c.b16 %v329, %v327
    %v418 = vpack.c.b16 %v330, %v328
    %v419 = vpack.c.b16 %v333, %v331
    %v420 = vpack.c.b16 %v334, %v332
    %v421 = vpack.c.b16 %v337, %v335
    %v422 = vpack.c.b16 %v338, %v336
    %v423 = vpack.c.b16 %v341, %v339
    %v424 = vpack.c.b16 %v342, %v340
    %v425 = vpack.c.b16 %v345, %v343
    %v426 = vpack.c.b16 %v346, %v344
    %v427 = vpack.c.b16 %v349, %v347
    %v428 = vpack.c.b16 %v350, %v348
    %v429 = vpack.c.b16 %v353, %v351
    %v430 = vpack.c.b16 %v354, %v352
    %v431 = vpack.c.b16 %v357, %v355
    %v432 = vpack.c.b16 %v358, %v356
    %v433 = vpack.c.b16 %v361, %v359
    %v434 = vpack.c.b16 %v362, %v360
    %v435 = vpack.c.b16 %v365, %v363
    %v436 = vpack.c.b16 %v366, %v364
    %v437 = vpack.c.b16 %v369, %v367
    %v438 = vpack.c.b16 %v370, %v368
    %v439 = vpack.c.b16 %v373, %v371
    %v440 = vpack.c.b16 %v374, %v372
    %v441 = vpack.c.b16 %v377, %v375
    %v442 = vpack.c.b16 %v378, %v376
    %507 = vmatprep.subr.bf16.mxu0 %v380
    %508 = vmatpush1.bf16.msra.mxu0 %v379
    %509 = vmatprep.subr.bf16.mxu0 %v382
    %510 = vmatpush1.bf16.msra.mxu0 %v381
    %511 = vmatprep.subr.bf16.mxu0 %v384
    %512 = vmatpush1.bf16.msra.mxu0 %v383
    %513 = vmatprep.subr.bf16.mxu0 %v386
    %514 = vmatpush1.bf16.msra.mxu0 %v385
    %515 = vmatprep.subr.bf16.mxu0 %v388
    %516 = vmatpush1.bf16.msra.mxu0 %v387
    %517 = vmatprep.subr.bf16.mxu0 %v390
    %518 = vmatpush1.bf16.msra.mxu0 %v389
    %519 = vmatprep.subr.bf16.mxu0 %v392
    %520 = vmatpush1.bf16.msra.mxu0 %v391
    %521 = vmatprep.subr.bf16.mxu0 %v394
    %522 = vmatpush1.bf16.msra.mxu0 %v393
    %523 = vmatprep.subr.bf16.mxu0 %v396
    %524 = vmatpush1.bf16.msra.mxu0 %v395
    %525 = vmatprep.subr.bf16.mxu0 %v398
    %526 = vmatpush1.bf16.msra.mxu0 %v397
    %527 = vmatprep.subr.bf16.mxu0 %v400
    %528 = vmatpush1.bf16.msra.mxu0 %v399
    %529 = vmatprep.subr.bf16.mxu0 %v402
    %530 = vmatpush1.bf16.msra.mxu0 %v401
    %531 = vmatprep.subr.bf16.mxu0 %v404
    %532 = vmatpush1.bf16.msra.mxu0 %v403
    %533 = vmatprep.subr.bf16.mxu0 %v406
    %534 = vmatpush1.bf16.msra.mxu0 %v405
    %535 = vmatprep.subr.bf16.mxu0 %v408
    %536 = vmatpush1.bf16.msra.mxu0 %v407
    %537 = vmatprep.subr.bf16.mxu0 %v410
    %538 = vmatpush1.bf16.msra.mxu0 %v409
    %539 = vmatprep.mubr.bf16.mxu0 %v180
    %540 = vmatmul.mubr.bf16.gmra.mrb[0].mxu0 %v173
    %v541 = vpop.f32.mrb[0].mxu0
    %v542 = vadd.f32 %v151, %v541
    %v543 = vpop.f32.mrb[0].mxu0
    %v544 = vadd.f32 %v155, %v543
    %v545 = vpop.f32.mrb[0].mxu0
    %v546 = vpop.f32.mrb[0].mxu0
    %547 = vdwg.mxu0
    %548 = vmatprep.subr.bf16.mxu0 %v412
    %549 = vmatpush1.bf16.msra.mxu0 %v411
    %550 = vmatprep.subr.bf16.mxu0 %v414
    %551 = vmatpush1.bf16.msra.mxu0 %v413
    %552 = vmatprep.subr.bf16.mxu0 %v416
    %553 = vmatpush1.bf16.msra.mxu0 %v415
    %554 = vmatprep.subr.bf16.mxu0 %v418
    %555 = vmatpush1.bf16.msra.mxu0 %v417
    %556 = vmatprep.subr.bf16.mxu0 %v420
    %557 = vmatpush1.bf16.msra.mxu0 %v419
    %558 = vmatprep.subr.bf16.mxu0 %v422
    %559 = vmatpush1.bf16.msra.mxu0 %v421
    %560 = vmatprep.subr.bf16.mxu0 %v424
    %561 = vmatpush1.bf16.msra.mxu0 %v423
    %562 = vmatprep.subr.bf16.mxu0 %v426
    %563 = vmatpush1.bf16.msra.mxu0 %v425
    %564 = vmatprep.subr.bf16.mxu0 %v428
    %565 = vmatpush1.bf16.msra.mxu0 %v427
    %566 = vmatprep.subr.bf16.mxu0 %v430
    %567 = vmatpush1.bf16.msra.mxu0 %v429
    %568 = vmatprep.subr.bf16.mxu0 %v432
    %569 = vmatpush1.bf16.msra.mxu0 %v431
    %570 = vmatprep.subr.bf16.mxu0 %v434
    %571 = vmatpush1.bf16.msra.mxu0 %v433
    %572 = vmatprep.subr.bf16.mxu0 %v436
    %573 = vmatpush1.bf16.msra.mxu0 %v435
    %574 = vmatprep.subr.bf16.mxu0 %v438
    %575 = vmatpush1.bf16.msra.mxu0 %v437
    %576 = vmatprep.subr.bf16.mxu0 %v440
    %577 = vmatpush1.bf16.msra.mxu0 %v439
    %578 = vmatprep.subr.bf16.mxu0 %v442
    %579 = vmatpush1.bf16.msra.mxu0 %v441
    %580 = vmatprep.mubr.bf16.mxu0 %v182
    %581 = vmatmul.mubr.bf16.gmra.mrb[0].mxu0 %v181
    %v582 = vpop.f32.mrb[0].mxu0
    %v583 = vadd.f32 %v542, %v582
    %v584 = vpop.f32.mrb[0].mxu0
    %v585 = vadd.f32 %v544, %v584
    %v586 = vpop.f32.mrb[0].mxu0
    %v587 = vpop.f32.mrb[0].mxu0
    %588 = vdwg.mxu0
    %v589 = vmax.f32 %v583, 0.0
    %v590 = vmax.f32 %v585, 0.0
    %v591 = vld [vmem:[#allocation8] sm:$0xff]
    %v592 = vld [vmem:[#allocation8 + $0x8] sm:$0xff]
    %v593 = vld [vmem:[#allocation8 + $0x10] sm:$0xff]
    %v594 = vld [vmem:[#allocation8 + $0x18] sm:$0xff]
    %v595 = vld [vmem:[#allocation8 + $0x20] sm:$0xff]
    %v596 = vld [vmem:[#allocation8 + $0x28] sm:$0xff]
    %v597 = vld [vmem:[#allocation8 + $0x30] sm:$0xff]
    %v598 = vld [vmem:[#allocation8 + $0x38] sm:$0xff]
    %v599 = vld [vmem:[#allocation8 + $0x40] sm:$0xff]
    %v600 = vld [vmem:[#allocation8 + $0x48] sm:$0xff]
    %v601 = vld [vmem:[#allocation8 + $0x50] sm:$0xff]
    %v602 = vld [vmem:[#allocation8 + $0x58] sm:$0xff]
    %v603 = vld [vmem:[#allocation8 + $0x60] sm:$0xff]
    %v604 = vld [vmem:[#allocation8 + $0x68] sm:$0xff]
    %v605 = vld [vmem:[#allocation8 + $0x70] sm:$0xff]
    %v606 = vld [vmem:[#allocation8 + $0x78] sm:$0xff]
    %v607 = vld [vmem:[#allocation8 + $0x80] sm:$0xff]
    %v608 = vld [vmem:[#allocation8 + $0x88] sm:$0xff]
    %v609 = vld [vmem:[#allocation8 + $0x90] sm:$0xff]
    %v610 = vld [vmem:[#allocation8 + $0x98] sm:$0xff]
    %v611 = vld [vmem:[#allocation8 + $0xa0] sm:$0xff]
    %v612 = vld [vmem:[#allocation8 + $0xa8] sm:$0xff]
    %v613 = vld [vmem:[#allocation8 + $0xb0] sm:$0xff]
    %v614 = vld [vmem:[#allocation8 + $0xb8] sm:$0xff]
    %v615 = vld [vmem:[#allocation8 + $0xc0] sm:$0xff]
    %v616 = vld [vmem:[#allocation8 + $0xc8] sm:$0xff]
    %v617 = vld [vmem:[#allocation8 + $0xd0] sm:$0xff]
    %v618 = vld [vmem:[#allocation8 + $0xd8] sm:$0xff]
    %v619 = vld [vmem:[#allocation8 + $0xe0] sm:$0xff]
    %v620 = vld [vmem:[#allocation8 + $0xe8] sm:$0xff]
    %v621 = vld [vmem:[#allocation8 + $0xf0] sm:$0xff]
    %v622 = vld [vmem:[#allocation8 + $0xf8] sm:$0xff]
    %v623 = vpack.c.bf16 %v589, %v589
    %v624 = vpack.c.bf16 %v590, %v590
    %s625 = scalar_lea.vmem %s5, 1
    %v626 = vld [vmem:[%s625] ss:$4 sm:$0x3]
    %v628 = vlaneseq
    %v629 = vshrl.u32 %v628, 7
    %v630 = vsub.s32 0, %v629
    %v631 = vrot.slane %v626, %v630
    %v632 = vlaneseq
    %v633 = vshrl.u32 %v632, 7
    %v634 = vsub.s32 1, %v633
    %v635 = vrot.slane %v626, %v634
    %v670 = vunpack.c.l.b16 %v591
    %v671 = vunpack.c.h.b16 %v591
    %v672 = vunpack.c.l.b16 %v592
    %v673 = vunpack.c.h.b16 %v592
    %v674 = vunpack.c.l.b16 %v593
    %v675 = vunpack.c.h.b16 %v593
    %v676 = vunpack.c.l.b16 %v594
    %v677 = vunpack.c.h.b16 %v594
    %v678 = vunpack.c.l.b16 %v595
    %v679 = vunpack.c.h.b16 %v595
    %v680 = vunpack.c.l.b16 %v596
    %v681 = vunpack.c.h.b16 %v596
    %v682 = vunpack.c.l.b16 %v597
    %v683 = vunpack.c.h.b16 %v597
    %v684 = vunpack.c.l.b16 %v598
    %v685 = vunpack.c.h.b16 %v598
    %v686 = vunpack.c.l.b16 %v599
    %v687 = vunpack.c.h.b16 %v599
    %v688 = vunpack.c.l.b16 %v600
    %v689 = vunpack.c.h.b16 %v600
    %v690 = vunpack.c.l.b16 %v601
    %v691 = vunpack.c.h.b16 %v601
    %v692 = vunpack.c.l.b16 %v602
    %v693 = vunpack.c.h.b16 %v602
    %v694 = vunpack.c.l.b16 %v603
    %v695 = vunpack.c.h.b16 %v603
    %v696 = vunpack.c.l.b16 %v604
    %v697 = vunpack.c.h.b16 %v604
    %v698 = vunpack.c.l.b16 %v605
    %v699 = vunpack.c.h.b16 %v605
    %v700 = vunpack.c.l.b16 %v606
    %v701 = vunpack.c.h.b16 %v606
    %v702 = vunpack.c.l.b16 %v607
    %v703 = vunpack.c.h.b16 %v607
    %v704 = vunpack.c.l.b16 %v608
    %v705 = vunpack.c.h.b16 %v608
    %v706 = vunpack.c.l.b16 %v609
    %v707 = vunpack.c.h.b16 %v609
    %v708 = vunpack.c.l.b16 %v610
    %v709 = vunpack.c.h.b16 %v610
    %v710 = vunpack.c.l.b16 %v611
    %v711 = vunpack.c.h.b16 %v611
    %v712 = vunpack.c.l.b16 %v612
    %v713 = vunpack.c.h.b16 %v612
    %v714 = vunpack.c.l.b16 %v613
    %v715 = vunpack.c.h.b16 %v613
    %v716 = vunpack.c.l.b16 %v614
    %v717 = vunpack.c.h.b16 %v614
    %v718 = vunpack.c.l.b16 %v615
    %v719 = vunpack.c.h.b16 %v615
    %v720 = vunpack.c.l.b16 %v616
    %v721 = vunpack.c.h.b16 %v616
    %v722 = vunpack.c.l.b16 %v617
    %v723 = vunpack.c.h.b16 %v617
    %v724 = vunpack.c.l.b16 %v618
    %v725 = vunpack.c.h.b16 %v618
    %v726 = vunpack.c.l.b16 %v619
    %v727 = vunpack.c.h.b16 %v619
    %v728 = vunpack.c.l.b16 %v620
    %v729 = vunpack.c.h.b16 %v620
    %v730 = vunpack.c.l.b16 %v621
    %v731 = vunpack.c.h.b16 %v621
    %v732 = vunpack.c.l.b16 %v622
    %v733 = vunpack.c.h.b16 %v622
    %v734 = vpack.c.b16 %v672, %v670
    %v735 = vpack.c.b16 %v673, %v671
    %v736 = vpack.c.b16 %v676, %v674
    %v737 = vpack.c.b16 %v677, %v675
    %v738 = vpack.c.b16 %v680, %v678
    %v739 = vpack.c.b16 %v681, %v679
    %v740 = vpack.c.b16 %v684, %v682
    %v741 = vpack.c.b16 %v685, %v683
    %v742 = vpack.c.b16 %v688, %v686
    %v743 = vpack.c.b16 %v689, %v687
    %v744 = vpack.c.b16 %v692, %v690
    %v745 = vpack.c.b16 %v693, %v691
    %v746 = vpack.c.b16 %v696, %v694
    %v747 = vpack.c.b16 %v697, %v695
    %v748 = vpack.c.b16 %v700, %v698
    %v749 = vpack.c.b16 %v701, %v699
    %v750 = vpack.c.b16 %v704, %v702
    %v751 = vpack.c.b16 %v705, %v703
    %v752 = vpack.c.b16 %v708, %v706
    %v753 = vpack.c.b16 %v709, %v707
    %v754 = vpack.c.b16 %v712, %v710
    %v755 = vpack.c.b16 %v713, %v711
    %v756 = vpack.c.b16 %v716, %v714
    %v757 = vpack.c.b16 %v717, %v715
    %v758 = vpack.c.b16 %v720, %v718
    %v759 = vpack.c.b16 %v721, %v719
    %v760 = vpack.c.b16 %v724, %v722
    %v761 = vpack.c.b16 %v725, %v723
    %v762 = vpack.c.b16 %v728, %v726
    %v763 = vpack.c.b16 %v729, %v727
    %v764 = vpack.c.b16 %v732, %v730
    %v765 = vpack.c.b16 %v733, %v731
    %798 = vmatprep.subr.bf16.mxu0 %v735
    %799 = vmatpush1.bf16.msra.mxu0 %v734
    %800 = vmatprep.subr.bf16.mxu0 %v737
    %801 = vmatpush1.bf16.msra.mxu0 %v736
    %802 = vmatprep.subr.bf16.mxu0 %v739
    %803 = vmatpush1.bf16.msra.mxu0 %v738
    %804 = vmatprep.subr.bf16.mxu0 %v741
    %805 = vmatpush1.bf16.msra.mxu0 %v740
    %806 = vmatprep.subr.bf16.mxu0 %v743
    %807 = vmatpush1.bf16.msra.mxu0 %v742
    %808 = vmatprep.subr.bf16.mxu0 %v745
    %809 = vmatpush1.bf16.msra.mxu0 %v744
    %810 = vmatprep.subr.bf16.mxu0 %v747
    %811 = vmatpush1.bf16.msra.mxu0 %v746
    %812 = vmatprep.subr.bf16.mxu0 %v749
    %813 = vmatpush1.bf16.msra.mxu0 %v748
    %814 = vmatprep.subr.bf16.mxu0 %v751
    %815 = vmatpush1.bf16.msra.mxu0 %v750
    %816 = vmatprep.subr.bf16.mxu0 %v753
    %817 = vmatpush1.bf16.msra.mxu0 %v752
    %818 = vmatprep.subr.bf16.mxu0 %v755
    %819 = vmatpush1.bf16.msra.mxu0 %v754
    %820 = vmatprep.subr.bf16.mxu0 %v757
    %821 = vmatpush1.bf16.msra.mxu0 %v756
    %822 = vmatprep.subr.bf16.mxu0 %v759
    %823 = vmatpush1.bf16.msra.mxu0 %v758
    %824 = vmatprep.subr.bf16.mxu0 %v761
    %825 = vmatpush1.bf16.msra.mxu0 %v760
    %826 = vmatprep.subr.bf16.mxu0 %v763
    %827 = vmatpush1.bf16.msra.mxu0 %v762
    %828 = vmatprep.subr.bf16.mxu0 %v765
    %829 = vmatpush1.bf16.msra.mxu0 %v764
    %830 = vmatprep.mubr.bf16.mxu0 %v624
    %831 = vmatmul.mubr.bf16.gmra.mrb[0].mxu0 %v623
    %v832 = vpop.f32.mrb[0].mxu0
    %v833 = vadd.f32 %v631, %v832
    %v834 = vpop.f32.mrb[0].mxu0
    %v835 = vadd.f32 %v635, %v834
    %v836 = vpop.f32.mrb[0].mxu0
    %v837 = vpop.f32.mrb[0].mxu0
    %838 = vdwg.mxu0
    %v839 = vld [vmem:[#allocation9] sm:$0xff]
    %v840 = vld [vmem:[#allocation9 + $0x8] sm:$0xff]
    %v841 = vld [vmem:[#allocation9 + $0x10] sm:$0xff]
    %v842 = vld [vmem:[#allocation9 + $0x18] sm:$0xff]
    %v843 = vld [vmem:[#allocation9 + $0x20] sm:$0xff]
    %v844 = vld [vmem:[#allocation9 + $0x28] sm:$0xff]
    %v845 = vld [vmem:[#allocation9 + $0x30] sm:$0xff]
    %v846 = vld [vmem:[#allocation9 + $0x38] sm:$0xff]
    %v847 = vld [vmem:[#allocation9 + $0x40] sm:$0xff]
    %v848 = vld [vmem:[#allocation9 + $0x48] sm:$0xff]
    %v849 = vld [vmem:[#allocation9 + $0x50] sm:$0xff]
    %v850 = vld [vmem:[#allocation9 + $0x58] sm:$0xff]
    %v851 = vld [vmem:[#allocation9 + $0x60] sm:$0xff]
    %v852 = vld [vmem:[#allocation9 + $0x68] sm:$0xff]
    %v853 = vld [vmem:[#allocation9 + $0x70] sm:$0xff]
    %v854 = vld [vmem:[#allocation9 + $0x78] sm:$0xff]
    %v855 = vld [vmem:[#allocation9 + $0x80] sm:$0xff]
    %v856 = vld [vmem:[#allocation9 + $0x88] sm:$0xff]
    %v857 = vld [vmem:[#allocation9 + $0x90] sm:$0xff]
    %v858 = vld [vmem:[#allocation9 + $0x98] sm:$0xff]
    %v859 = vld [vmem:[#allocation9 + $0xa0] sm:$0xff]
    %v860 = vld [vmem:[#allocation9 + $0xa8] sm:$0xff]
    %v861 = vld [vmem:[#allocation9 + $0xb0] sm:$0xff]
    %v862 = vld [vmem:[#allocation9 + $0xb8] sm:$0xff]
    %v863 = vld [vmem:[#allocation9 + $0xc0] sm:$0xff]
    %v864 = vld [vmem:[#allocation9 + $0xc8] sm:$0xff]
    %v865 = vld [vmem:[#allocation9 + $0xd0] sm:$0xff]
    %v866 = vld [vmem:[#allocation9 + $0xd8] sm:$0xff]
    %v867 = vld [vmem:[#allocation9 + $0xe0] sm:$0xff]
    %v868 = vld [vmem:[#allocation9 + $0xe8] sm:$0xff]
    %v869 = vld [vmem:[#allocation9 + $0xf0] sm:$0xff]
    %v870 = vld [vmem:[#allocation9 + $0xf8] sm:$0xff]
    %s871 = scalar_lea.vmem %s5, 2
    %v872 = vld [vmem:[%s871] ss:$4 sm:$0x3]
    %s873 = scalar_lea.vmem %s5, 3
    %v874 = vld [vmem:[%s873] ss:$4 sm:$0x3]
    %v875 = vpack.c.bf16 %v833, %v833
    %v876 = vpack.c.bf16 %v835, %v835
    %v877 = vmul.bf16 %v875, %v875
    %v878 = vmul.bf16 %v876, %v876
    %v911 = vunpack.c.l.b16 %v839
    %v912 = vunpack.c.h.b16 %v839
    %v913 = vunpack.c.l.b16 %v840
    %v914 = vunpack.c.h.b16 %v840
    %v915 = vunpack.c.l.b16 %v841
    %v916 = vunpack.c.h.b16 %v841
    %v917 = vunpack.c.l.b16 %v842
    %v918 = vunpack.c.h.b16 %v842
    %v919 = vunpack.c.l.b16 %v843
    %v920 = vunpack.c.h.b16 %v843
    %v921 = vunpack.c.l.b16 %v844
    %v922 = vunpack.c.h.b16 %v844
    %v923 = vunpack.c.l.b16 %v845
    %v924 = vunpack.c.h.b16 %v845
    %v925 = vunpack.c.l.b16 %v846
    %v926 = vunpack.c.h.b16 %v846
    %v927 = vunpack.c.l.b16 %v847
    %v928 = vunpack.c.h.b16 %v847
    %v929 = vunpack.c.l.b16 %v848
    %v930 = vunpack.c.h.b16 %v848
    %v931 = vunpack.c.l.b16 %v849
    %v932 = vunpack.c.h.b16 %v849
    %v933 = vunpack.c.l.b16 %v850
    %v934 = vunpack.c.h.b16 %v850
    %v935 = vunpack.c.l.b16 %v851
    %v936 = vunpack.c.h.b16 %v851
    %v937 = vunpack.c.l.b16 %v852
    %v938 = vunpack.c.h.b16 %v852
    %v939 = vunpack.c.l.b16 %v853
    %v940 = vunpack.c.h.b16 %v853
    %v941 = vunpack.c.l.b16 %v854
    %v942 = vunpack.c.h.b16 %v854
    %v943 = vunpack.c.l.b16 %v855
    %v944 = vunpack.c.h.b16 %v855
    %v945 = vunpack.c.l.b16 %v856
    %v946 = vunpack.c.h.b16 %v856
    %v947 = vunpack.c.l.b16 %v857
    %v948 = vunpack.c.h.b16 %v857
    %v949 = vunpack.c.l.b16 %v858
    %v950 = vunpack.c.h.b16 %v858
    %v951 = vunpack.c.l.b16 %v859
    %v952 = vunpack.c.h.b16 %v859
    %v953 = vunpack.c.l.b16 %v860
    %v954 = vunpack.c.h.b16 %v860
    %v955 = vunpack.c.l.b16 %v861
    %v956 = vunpack.c.h.b16 %v861
    %v957 = vunpack.c.l.b16 %v862
    %v958 = vunpack.c.h.b16 %v862
    %v959 = vunpack.c.l.b16 %v863
    %v960 = vunpack.c.h.b16 %v863
    %v961 = vunpack.c.l.b16 %v864
    %v962 = vunpack.c.h.b16 %v864
    %v963 = vunpack.c.l.b16 %v865
    %v964 = vunpack.c.h.b16 %v865
    %v965 = vunpack.c.l.b16 %v866
    %v966 = vunpack.c.h.b16 %v866
    %v967 = vunpack.c.l.b16 %v867
    %v968 = vunpack.c.h.b16 %v867
    %v969 = vunpack.c.l.b16 %v868
    %v970 = vunpack.c.h.b16 %v868
    %v971 = vunpack.c.l.b16 %v869
    %v972 = vunpack.c.h.b16 %v869
    %v973 = vunpack.c.l.b16 %v870
    %v974 = vunpack.c.h.b16 %v870
    %v975 = vpack.c.b16 %v913, %v911
    %v976 = vpack.c.b16 %v914, %v912
    %v977 = vpack.c.b16 %v917, %v915
    %v978 = vpack.c.b16 %v918, %v916
    %v979 = vpack.c.b16 %v921, %v919
    %v980 = vpack.c.b16 %v922, %v920
    %v981 = vpack.c.b16 %v925, %v923
    %v982 = vpack.c.b16 %v926, %v924
    %v983 = vpack.c.b16 %v929, %v927
    %v984 = vpack.c.b16 %v930, %v928
    %v985 = vpack.c.b16 %v933, %v931
    %v986 = vpack.c.b16 %v934, %v932
    %v987 = vpack.c.b16 %v937, %v935
    %v988 = vpack.c.b16 %v938, %v936
    %v989 = vpack.c.b16 %v941, %v939
    %v990 = vpack.c.b16 %v942, %v940
    %v991 = vpack.c.b16 %v945, %v943
    %v992 = vpack.c.b16 %v946, %v944
    %v993 = vpack.c.b16 %v949, %v947
    %v994 = vpack.c.b16 %v950, %v948
    %v995 = vpack.c.b16 %v953, %v951
    %v996 = vpack.c.b16 %v954, %v952
    %v997 = vpack.c.b16 %v957, %v955
    %v998 = vpack.c.b16 %v958, %v956
    %v999 = vpack.c.b16 %v961, %v959
    %v1000 = vpack.c.b16 %v962, %v960
    %v1001 = vpack.c.b16 %v965, %v963
    %v1002 = vpack.c.b16 %v966, %v964
    %v1003 = vpack.c.b16 %v969, %v967
    %v1004 = vpack.c.b16 %v970, %v968
    %v1005 = vpack.c.b16 %v973, %v971
    %v1006 = vpack.c.b16 %v974, %v972
    %1039 = vmatprep.subr.bf16.mxu0 %v976
    %1040 = vmatpush1.bf16.msra.mxu0 %v975
    %1041 = vmatprep.subr.bf16.mxu0 %v978
    %1042 = vmatpush1.bf16.msra.mxu0 %v977
    %1043 = vmatprep.subr.bf16.mxu0 %v980
    %1044 = vmatpush1.bf16.msra.mxu0 %v979
    %1045 = vmatprep.subr.bf16.mxu0 %v982
    %1046 = vmatpush1.bf16.msra.mxu0 %v981
    %1047 = vmatprep.subr.bf16.mxu0 %v984
    %1048 = vmatpush1.bf16.msra.mxu0 %v983
    %1049 = vmatprep.subr.bf16.mxu0 %v986
    %1050 = vmatpush1.bf16.msra.mxu0 %v985
    %1051 = vmatprep.subr.bf16.mxu0 %v988
    %1052 = vmatpush1.bf16.msra.mxu0 %v987
    %1053 = vmatprep.subr.bf16.mxu0 %v990
    %1054 = vmatpush1.bf16.msra.mxu0 %v989
    %1055 = vmatprep.subr.bf16.mxu0 %v992
    %1056 = vmatpush1.bf16.msra.mxu0 %v991
    %1057 = vmatprep.subr.bf16.mxu0 %v994
    %1058 = vmatpush1.bf16.msra.mxu0 %v993
    %1059 = vmatprep.subr.bf16.mxu0 %v996
    %1060 = vmatpush1.bf16.msra.mxu0 %v995
    %1061 = vmatprep.subr.bf16.mxu0 %v998
    %1062 = vmatpush1.bf16.msra.mxu0 %v997
    %1063 = vmatprep.subr.bf16.mxu0 %v1000
    %1064 = vmatpush1.bf16.msra.mxu0 %v999
    %1065 = vmatprep.subr.bf16.mxu0 %v1002
    %1066 = vmatpush1.bf16.msra.mxu0 %v1001
    %1067 = vmatprep.subr.bf16.mxu0 %v1004
    %1068 = vmatpush1.bf16.msra.mxu0 %v1003
    %1069 = vmatprep.subr.bf16.mxu0 %v1006
    %1070 = vmatpush1.bf16.msra.mxu0 %v1005
    %1071 = vmatprep.mubr.bf16.mxu0 %v876
    %1072 = vmatmul.mubr.bf16.gmra.mrb[0].mxu0 %v875
    %v1073 = vpop.f32.mrb[0].mxu0
    %v1074 = vadd.f32 0.0, %v1073
    %v1075 = vpop.f32.mrb[0].mxu0
    %v1076 = vadd.f32 0.0, %v1075
    %v1077 = vpop.f32.mrb[0].mxu0
    %v1078 = vpop.f32.mrb[0].mxu0
    %1079 = vdwg.mxu0
    %1080 = vmatprep.subr.bf16.mxu0 %v976
    %1081 = vmatpush1.bf16.msra.mxu0 %v975
    %1082 = vmatprep.subr.bf16.mxu0 %v978
    %1083 = vmatpush1.bf16.msra.mxu0 %v977
    %1084 = vmatprep.subr.bf16.mxu0 %v980
    %1085 = vmatpush1.bf16.msra.mxu0 %v979
    %1086 = vmatprep.subr.bf16.mxu0 %v982
    %1087 = vmatpush1.bf16.msra.mxu0 %v981
    %1088 = vmatprep.subr.bf16.mxu0 %v984
    %1089 = vmatpush1.bf16.msra.mxu0 %v983
    %1090 = vmatprep.subr.bf16.mxu0 %v986
    %1091 = vmatpush1.bf16.msra.mxu0 %v985
    %1092 = vmatprep.subr.bf16.mxu0 %v988
    %1093 = vmatpush1.bf16.msra.mxu0 %v987
    %1094 = vmatprep.subr.bf16.mxu0 %v990
    %1095 = vmatpush1.bf16.msra.mxu0 %v989
    %1096 = vmatprep.subr.bf16.mxu0 %v992
    %1097 = vmatpush1.bf16.msra.mxu0 %v991
    %1098 = vmatprep.subr.bf16.mxu0 %v994
    %1099 = vmatpush1.bf16.msra.mxu0 %v993
    %1100 = vmatprep.subr.bf16.mxu0 %v996
    %1101 = vmatpush1.bf16.msra.mxu0 %v995
    %1102 = vmatprep.subr.bf16.mxu0 %v998
    %1103 = vmatpush1.bf16.msra.mxu0 %v997
    %1104 = vmatprep.subr.bf16.mxu0 %v1000
    %1105 = vmatpush1.bf16.msra.mxu0 %v999
    %1106 = vmatprep.subr.bf16.mxu0 %v1002
    %1107 = vmatpush1.bf16.msra.mxu0 %v1001
    %1108 = vmatprep.subr.bf16.mxu0 %v1004
    %1109 = vmatpush1.bf16.msra.mxu0 %v1003
    %1110 = vmatprep.subr.bf16.mxu0 %v1006
    %1111 = vmatpush1.bf16.msra.mxu0 %v1005
    %1112 = vmatprep.mubr.bf16.mxu0 %v878
    %1113 = vmatmul.mubr.bf16.gmra.mrb[0].mxu0 %v877
    %v1114 = vpop.f32.mrb[0].mxu0
    %v1115 = vadd.f32 0.0, %v1114
    %v1116 = vpop.f32.mrb[0].mxu0
    %v1117 = vadd.f32 0.0, %v1116
    %v1118 = vpop.f32.mrb[0].mxu0
    %v1119 = vpop.f32.mrb[0].mxu0
    %1120 = vdwg.mxu0
    %v1121 = vmul.f32 %v1074, %v1074
    %v1122 = vmul.f32 %v1076, %v1076
    %v1123 = vsub.f32 %v1115, %v1121
    %v1124 = vsub.f32 %v1117, %v1122
    %v1125 = vmax.f32 %v1123, 0.0
    %v1126 = vmax.f32 %v1124, 0.0
    %v1127 = vsub.f32 %v833, %v1074
    %v1128 = vsub.f32 %v835, %v1076
    %v1129 = vadd.f32 %v1125, 1e-05
    %v1130 = vadd.f32 %v1126, 1e-05
    %v1131 = vrsqrt.pop %v1129
    %v1132 = vrsqrt.pop %v1130
    %v1133 = vmul.f32 %v1127, %v1131
    %v1134 = vmul.f32 %v1128, %v1132
    %v1136 = vlaneseq
    %v1137 = vshrl.u32 %v1136, 7
    %v1138 = vsub.s32 0, %v1137
    %v1139 = vrot.slane %v872, %v1138
    %v1140 = vlaneseq
    %v1141 = vshrl.u32 %v1140, 7
    %v1142 = vsub.s32 1, %v1141
    %v1143 = vrot.slane %v872, %v1142
    %v1146 = vmul.f32 %v1133, %v1139
    %v1147 = vmul.f32 %v1134, %v1143
    %v1149 = vlaneseq
    %v1150 = vshrl.u32 %v1149, 7
    %v1151 = vsub.s32 0, %v1150
    %v1152 = vrot.slane %v874, %v1151
    %v1153 = vlaneseq
    %v1154 = vshrl.u32 %v1153, 7
    %v1155 = vsub.s32 1, %v1154
    %v1156 = vrot.slane %v874, %v1155
    %v1159 = vadd.f32 %v1146, %v1152
    %v1160 = vadd.f32 %v1147, %v1156
    %v1163 = vcombine.low %v1159, %v1160
    %v1165 = vunpack.c.l.s4 1983009808
    %v1166 = vunpack.c.0.s8 %v1165
    %v1167 = vlaneseq
    %v1168 = vshrl.u32 %v1167, 7
    %v1169 = vsub.s32 %v1166, %v1168
    %v1170 = vrot.slane %v1163, %v1169
    %1172 = vst [vmem:[#allocation11] sm:$0xf] %v1170
    // Predicated region
    $region42: #{tpu_custom_call.1} parent=1 // pred_check
      _
    $region43: #{tpu_custom_call.1} parent=1 // pred_check_branch
      %1174 = sbr.rel (0) target = $region45
    $region44: #{tpu_custom_call.1} parent=1 // pred_region
      %s1176 = ssub.s32 64, 64
      %1177 = vsyncadd [#allocation5], %s1176
      %s1179 = sshll.u32 [#allocation11], 4
      %s1180 = int_to_ptr.vmem [resolvable:$true] %s1179
      %1182 = dma.vmem_to_hbm [thread:$0]  %s1180, 64, %s6, [#allocation5]
    $region45: #{tpu_custom_call.1} parent=1 // pred_fallthru
      _
    // Predicated region
    $region46: #{tpu_custom_call.1} parent=1 // pred_check
      _
    $region47: #{tpu_custom_call.1} parent=1 // pred_check_branch
      %1184 = sbr.rel (0) target = $region49
    $region48: #{tpu_custom_call.1} parent=1 // pred_region
      %1185 = dma.done [#allocation5], 64
    $region49: #{tpu_custom_call.1} parent=1 // pred_fallthru
      _
    %1186 = vsyncpa [#allocation4], 1
    %1187 = vsyncpa [#allocation7], 1
    %1188 = vsyncpa [#allocation10], 1
    %1189 = vsyncpa [#allocation5], 1

</llo_original>
